<compile_context>
chip_gen: v6e
topology: v6e:2x2x1
jax: 0.10.0
libtpu: 0.0.40
codegen_flags: <defaults>
</compile_context>

<pallas_src>
import functools

import jax
import jax.numpy as jnp
from jax import lax
from jax.experimental import pallas as pl
from jax.experimental.pallas import tpu as pltpu


def channel_attention_kernel(w1t_ref, w2_ref, x_ref, o_ref, *, hw_true):
    # w1t_ref: (C, Hp)      == W1.T zero-padded on the hidden axis        (VMEM, f32)
    # w2_ref : (C, Hp)      == W2   zero-padded on the hidden axis        (VMEM, f32)
    # x_ref  : (Bt, C, HWp) Bt batch elements, lane-dense spatial axis    (VMEM, native)
    # o_ref  : (Bt, C, HWp) output                                        (VMEM, native)
    x = x_ref[...]                                         # native dtype, never cast whole
    hwp = x.shape[-1]

    # Global average pooling over the lane axis (f32 accumulation; spatial zero-pad
    # contributes 0 to the sum; divide by the TRUE H*W).
    s = jnp.sum(x.astype(jnp.float32), axis=-1, keepdims=True)   # (Bt, C, 1)
    avg = s / float(hw_true)

    # Global max pooling (mask padded lanes with -inf; skip entirely if no padding).
    if hwp != hw_true:
        lane = lax.broadcasted_iota(jnp.int32, x.shape, dimension=2)
        xm = jnp.where(lane < hw_true, x, jnp.asarray(-jnp.inf, dtype=x.dtype))
    else:
        xm = x
    mx = jnp.max(xm, axis=-1, keepdims=True).astype(jnp.float32)  # (Bt, C, 1)

    w1t = w1t_ref[...]                                     # (C, Hp)
    w2 = w2_ref[...]                                       # (C, Hp)

    def fc(p):                                             # p: (Bt, C, 1) f32
        # hidden = relu(W1 @ p): broadcast-multiply + reduction over C -> (Bt, 1, Hp)
        h = jnp.maximum(
            jnp.sum(p * w1t[None, :, :], axis=1, keepdims=True), 0.0)
        # out = W2 @ hidden: broadcast-multiply + lane reduction over Hp -> (Bt, C, 1)
        return jnp.sum(h * w2[None, :, :], axis=-1, keepdims=True)

    attn = jax.nn.sigmoid(fc(avg) + fc(mx))                # (Bt, C, 1) f32

    # Apply in the NATIVE dtype (single lane-dense store pass; padded lanes hold zeros
    # and are sliced off in the wrapper).
    o_ref[...] = x * attn.astype(x.dtype)


def channel_attention(x, w1, w2):
    """x: (B, C, H, W); w1: (C//r, C); w2: (C, C//r)  ->  (B, C, H, W)."""
    B, C, H, W = x.shape
    HW = H * W
    hidden = w1.shape[0]

    # Exact zero-padding of the fc hidden axis to a sublane multiple
    # (padded hidden rows give ReLU(0)=0 and multiply zero columns -> contribute 0).
    hp = max(8, ((hidden + 7) // 8) * 8)
    w1t_p = jnp.zeros((C, hp), jnp.float32).at[:, :hidden].set(w1.T.astype(jnp.float32))
    w2_p = jnp.zeros((C, hp), jnp.float32).at[:, :hidden].set(w2.astype(jnp.float32))

    # Lane-dense spatial axis: pad H*W to a multiple of 128 (zero pad; kernel masks
    # the max and divides the mean by the true H*W).
    HWp = ((HW + 127) // 128) * 128
    x2 = x.reshape(B, C, HW)
    if HWp != HW:
        x2 = jnp.pad(x2, ((0, 0), (0, 0), (0, HWp - HW)))

    itemsize = x.dtype.itemsize
    slab = C * HWp * itemsize                    # bytes of one batch element's block

    # Batch several images per grid step to amortize per-step overhead (~0.35 us),
    # targeting ~4 MiB blocks; keep grid >= 2 so v7x megacore has work for both TCs.
    target = 4 << 20
    Bt = 1
    for bt in range(1, B + 1):
        if B % bt != 0:
            continue
        if bt * slab > target:
            break
        if B >= 2 and (B // bt) < 2:
            continue
        Bt = bt
    grid = (B // Bt,)

    # VMEM budget: in + out blocks, double-buffered, plus resident weights + headroom.
    block_bytes = Bt * slab
    w_bytes = 2 * C * hp * 4
    vmem_needed = 4 * block_bytes + 2 * w_bytes + (2 << 20)
    vmem_limit = int(min(96 << 20, max(32 << 20, vmem_needed)))

    cost = pl.CostEstimate(
        flops=5 * B * C * HW + 8 * B * C * hp,   # pooling + apply; fc is negligible
        transcendentals=2 * B * C,               # sigmoid exp
        bytes_accessed=2 * B * C * HW * itemsize,
    )

    kernel = functools.partial(channel_attention_kernel, hw_true=HW)

    out = pl.pallas_call(
        kernel,
        out_shape=jax.ShapeDtypeStruct((B, C, HWp), x.dtype),
        grid=grid,
        in_specs=[
            pl.BlockSpec((C, hp), lambda b: (0, 0)),          # W1.T (full, resident)
            pl.BlockSpec((C, hp), lambda b: (0, 0)),          # W2   (full, resident)
            pl.BlockSpec((Bt, C, HWp), lambda b: (b, 0, 0)),  # x block
        ],
        out_specs=pl.BlockSpec((Bt, C, HWp), lambda b: (b, 0, 0)),
        compiler_params=pltpu.CompilerParams(
            dimension_semantics=("parallel",),
            vmem_limit_bytes=vmem_limit,
        ),
        cost_estimate=cost,
    )(w1t_p, w2_p, x2)

    if HWp != HW:
        out = out[:, :, :HW]
    return out.reshape(B, C, H, W)


def reference(x, w1, w2):
    """Pure-JAX reference mirroring the PyTorch forward."""
    avg = jnp.mean(x, axis=(2, 3))                        # (B, C)
    mx = jnp.max(x, axis=(2, 3))                          # (B, C)

    def fc(p):
        h = jnp.maximum(p @ w1.T, 0.0)                    # (B, C//r)
        return h @ w2.T                                   # (B, C)

    attn = jax.nn.sigmoid(fc(avg) + fc(mx))               # (B, C)
    return attn[:, :, None, None] * x


if __name__ == "__main__":
    key = jax.random.PRNGKey(0)
    kx, k1, k2 = jax.random.split(key, 3)

    # Small shapes consistent with the module (reduction_ratio=16 needs C >= 16).
    B, C, H, W = 2, 32, 16, 16
    reduction_ratio = 16
    hidden = C // reduction_ratio                         # 2

    x = jax.random.normal(kx, (B, C, H, W), dtype=jnp.float32)

    # Conv2d(.., kernel_size=1, bias=False) weights, squeezed from (O, I, 1, 1),
    # with PyTorch-style uniform init range 1/sqrt(fan_in).
    b1 = 1.0 / (C ** 0.5)
    w1 = jax.random.uniform(k1, (hidden, C), jnp.float32, minval=-b1, maxval=b1)
    b2 = 1.0 / (hidden ** 0.5)
    w2 = jax.random.uniform(k2, (C, hidden), jnp.float32, minval=-b2, maxval=b2)

    out = jax.block_until_ready(channel_attention(x, w1, w2))

    ref = reference(x, w1, w2)
    assert out.shape == (B, C, H, W)
    assert jnp.allclose(out, ref, atol=1e-5, rtol=1e-5), "mismatch vs reference"

    print("KERNEL_OK")
</pallas_src>

<mosaic_0001>
module attributes {stable_mosaic.version = 11 : i64} {
  func.func @channel_attention_kernel(%arg0: i32, %arg1: memref<32x8xf32, #tpu.memory_space<vmem>>, %arg2: memref<32x8xf32, #tpu.memory_space<vmem>>, %arg3: memref<1x32x256xf32, #tpu.memory_space<vmem>>, %arg4: memref<1x32x256xf32, #tpu.memory_space<vmem>>) attributes {dimension_semantics = [#tpu.dimension_semantics<parallel>], iteration_bounds = array<i64: 2>, scalar_prefetch = 0 : i64, scratch_operands = 0 : i64, tpu.core_type = #tpu.core_type<tc>, window_params = [{pipeline_mode = #tpu.pipeline_mode<synchronous>, transform_indices = @transform_0, window_bounds = array<i64: 32, 8>}, {pipeline_mode = #tpu.pipeline_mode<synchronous>, transform_indices = @transform_1, window_bounds = array<i64: 32, 8>}, {transform_indices = @transform_2, window_bounds = array<i64: 1, 32, 256>}, {transform_indices = @transform_3, window_bounds = array<i64: 1, 32, 256>}]} {
    %c0 = arith.constant 0 : index
    %c0_0 = arith.constant 0 : index
    %c0_1 = arith.constant 0 : index
    %0 = vector.load %arg3[%c0, %c0_0, %c0_1] : memref<1x32x256xf32, #tpu.memory_space<vmem>>, vector<1x32x256xf32>
    %cst = arith.constant dense<0.000000e+00> : vector<1x32xf32>
    %1 = vector.multi_reduction <add>, %0, %cst [2] : vector<1x32x256xf32> to vector<1x32xf32>
    %2 = vector.shape_cast %1 : vector<1x32xf32> to vector<1x32x1xf32>
    %cst_2 = arith.constant 2.560000e+02 : f32
    %3 = vector.broadcast %cst_2 : f32 to vector<1x32x1xf32>
    %4 = arith.divf %2, %3 : vector<1x32x1xf32>
    %cst_3 = arith.constant dense<0xFF800000> : vector<1x32xf32>
    %5 = vector.multi_reduction <maximumf>, %0, %cst_3 [2] : vector<1x32x256xf32> to vector<1x32xf32>
    %6 = vector.shape_cast %5 : vector<1x32xf32> to vector<1x32x1xf32>
    %c0_4 = arith.constant 0 : index
    %c0_5 = arith.constant 0 : index
    %7 = vector.load %arg1[%c0_4, %c0_5] : memref<32x8xf32, #tpu.memory_space<vmem>>, vector<32x8xf32>
    %c0_6 = arith.constant 0 : index
    %c0_7 = arith.constant 0 : index
    %8 = vector.load %arg2[%c0_6, %c0_7] : memref<32x8xf32, #tpu.memory_space<vmem>>, vector<32x8xf32>
    %9 = vector.shape_cast %7 : vector<32x8xf32> to vector<1x32x8xf32>
    %10 = vector.broadcast %4 : vector<1x32x1xf32> to vector<1x32x8xf32>
    %11 = arith.mulf %10, %9 : vector<1x32x8xf32>
    %cst_8 = arith.constant dense<0.000000e+00> : vector<1x8xf32>
    %12 = vector.multi_reduction <add>, %11, %cst_8 [1] : vector<1x32x8xf32> to vector<1x8xf32>
    %13 = vector.shape_cast %12 : vector<1x8xf32> to vector<1x1x8xf32>
    %cst_9 = arith.constant 0.000000e+00 : f32
    %14 = vector.broadcast %cst_9 : f32 to vector<1x1x8xf32>
    %15 = arith.maximumf %13, %14 : vector<1x1x8xf32>
    %16 = vector.shape_cast %8 : vector<32x8xf32> to vector<1x32x8xf32>
    %17 = vector.broadcast %15 : vector<1x1x8xf32> to vector<1x32x8xf32>
    %18 = arith.mulf %17, %16 : vector<1x32x8xf32>
    %cst_10 = arith.constant dense<0.000000e+00> : vector<1x32xf32>
    %19 = vector.multi_reduction <add>, %18, %cst_10 [2] : vector<1x32x8xf32> to vector<1x32xf32>
    %20 = vector.shape_cast %19 : vector<1x32xf32> to vector<1x32x1xf32>
    %21 = vector.shape_cast %7 : vector<32x8xf32> to vector<1x32x8xf32>
    %22 = vector.broadcast %6 : vector<1x32x1xf32> to vector<1x32x8xf32>
    %23 = arith.mulf %22, %21 : vector<1x32x8xf32>
    %cst_11 = arith.constant dense<0.000000e+00> : vector<1x8xf32>
    %24 = vector.multi_reduction <add>, %23, %cst_11 [1] : vector<1x32x8xf32> to vector<1x8xf32>
    %25 = vector.shape_cast %24 : vector<1x8xf32> to vector<1x1x8xf32>
    %cst_12 = arith.constant 0.000000e+00 : f32
    %26 = vector.broadcast %cst_12 : f32 to vector<1x1x8xf32>
    %27 = arith.maximumf %25, %26 : vector<1x1x8xf32>
    %28 = vector.shape_cast %8 : vector<32x8xf32> to vector<1x32x8xf32>
    %29 = vector.broadcast %27 : vector<1x1x8xf32> to vector<1x32x8xf32>
    %30 = arith.mulf %29, %28 : vector<1x32x8xf32>
    %cst_13 = arith.constant dense<0.000000e+00> : vector<1x32xf32>
    %31 = vector.multi_reduction <add>, %30, %cst_13 [2] : vector<1x32x8xf32> to vector<1x32xf32>
    %32 = vector.shape_cast %31 : vector<1x32xf32> to vector<1x32x1xf32>
    %33 = arith.addf %20, %32 : vector<1x32x1xf32>
    %34 = arith.negf %33 : vector<1x32x1xf32>
    %35 = math.exp %34 : vector<1x32x1xf32>
    %cst_14 = arith.constant 1.000000e+00 : f32
    %36 = vector.broadcast %cst_14 : f32 to vector<1x32x1xf32>
    %37 = arith.addf %36, %35 : vector<1x32x1xf32>
    %38 = arith.divf %36, %37 : vector<1x32x1xf32>
    %39 = vector.broadcast %38 : vector<1x32x1xf32> to vector<1x32x256xf32>
    %40 = arith.mulf %0, %39 : vector<1x32x256xf32>
    %c0_15 = arith.constant 0 : index
    %c0_16 = arith.constant 0 : index
    %c0_17 = arith.constant 0 : index
    %41 = vector.load %arg4[%c0_15, %c0_16, %c0_17] : memref<1x32x256xf32, #tpu.memory_space<vmem>>, vector<1x32x256xf32>
    tpu.vector_store %arg4[%c0_15, %c0_16, %c0_17], %40 {strides = array<i32>} : memref<1x32x256xf32, #tpu.memory_space<vmem>>, vector<1x32x256xf32>,
    return
  }
  func.func @transform_0(%arg0: i32) -> (i32, i32) {
    %c0_i32 = arith.constant 0 : i32
    %c0_i32_0 = arith.constant 0 : i32
    %c0_i32_1 = arith.constant 0 : i32
    return %c0_i32, %c0_i32_0 : i32, i32
  }
  func.func @transform_1(%arg0: i32) -> (i32, i32) {
    %c0_i32 = arith.constant 0 : i32
    %c0_i32_0 = arith.constant 0 : i32
    %c0_i32_1 = arith.constant 0 : i32
    return %c0_i32, %c0_i32_0 : i32, i32
  }
  func.func @transform_2(%arg0: i32) -> (i32, i32, i32) {
    %c0_i32 = arith.constant 0 : i32
    %c0_i32_0 = arith.constant 0 : i32
    %c0_i32_1 = arith.constant 0 : i32
    return %arg0, %c0_i32, %c0_i32_0 : i32, i32, i32
  }
  func.func @transform_3(%arg0: i32) -> (i32, i32, i32) {
    %c0_i32 = arith.constant 0 : i32
    %c0_i32_0 = arith.constant 0 : i32
    %c0_i32_1 = arith.constant 0 : i32
    return %arg0, %c0_i32, %c0_i32_0 : i32, i32, i32
  }
}

</mosaic_0001>

<llo_original>
// kernel: tpu_custom_call.1
$region0: #{tpu_custom_call.1}
  #allocation0 [shape = 'u32[]', space=smem, size = 0x4, offset = 0x4, fixed_abs, tag = 'smem constant byte address 0x4 - core index']
  #allocation1 [shape = 'u32[144,128]{1,0:T(1,128)}', space=vmem, size = 0x12000, scoped, tag = 'internal scratch']
  %s0 = inlined_call_operand.vmem [shape: f32[32,8], index: 0, kind: input, shape index: {}]
  %s1 = inlined_call_operand.vmem [shape: f32[32,8], index: 1, kind: input, shape index: {}]
  %s2 = inlined_call_operand.hbm [shape: f32[2,32,256], index: 2, kind: input, shape index: {}]
  %s3 = inlined_call_operand.hbm [shape: f32[2,32,256], index: 3, kind: output, shape index: {}]
  %s4 = sld [smem:[#allocation0]]
  $region49: #{tpu_custom_call.1} parent=0
    _
  %s6 = ssub.s32 1, %s4
  %s7 = scalar_select 0, %s6, %s4
  $region1: #{tpu_custom_call.1} parent=0
    #allocation2 [shape = 'u8[65536]{0}', space=vmem, size = 0x10000, scoped, tag = 'input window, operand 2']
    #allocation3 [shape = 's32[2]{0}', space=sflag, size = 0x8, scoped, tag = 'scoped memory for tpu_custom_call.1']
    #allocation4 [shape = 's32[2]{0}', space=sflag, size = 0x8, scoped, tag = 'scoped memory for tpu_custom_call.1']
    #allocation5 [shape = 'u8[65536]{0}', space=vmem, size = 0x10000, scoped, tag = 'output window, operand 0']
    %8 = vsyncpa [#allocation3], 0
    %s9 = scalar_lea.sflag [#allocation3], 1
    %10 = vsyncpa %s9, 0
    %11 = vsyncpa [#allocation4], 0
    %s12 = scalar_lea.sflag [#allocation4], 1
    %13 = vsyncpa %s12, 0
    loop: start=0, step=1, limit=4
    $region2: #{tpu_custom_call.1} parent=1 // loop_pre_header
      _
    $region3: #{tpu_custom_call.1} parent=1 // loop_header
      %s15 = sphi 0, %s19
      %p16 = scmp.ge.s32.totalorder %s15, 4
      %s23 = sphi 0, %s23
      %s25 = sphi 0, %s23
      %s26 = sphi 0, %s25
      %s40 = sphi 0, %s26
      %s44 = sphi 0, %s44
      %s46 = sphi 0, %s44
      %s47 = sphi 0, %s46
      %s61 = sphi 0, %s47
      %s67 = sphi 0, %s69
      %s70 = sphi 0, %s67
      %s71 = sphi 0, %s70
      %s87 = sphi 0, %s71
      %s93 = sphi 0, %s95
      %s96 = sphi 0, %s93
      %s97 = sphi 0, %s96
      %s113 = sphi 0, %s97
    $region4: #{tpu_custom_call.1} parent=1 // loop_header_branch
      %18 = sbr.rel (%p16) target = $region8
    $region5: #{tpu_custom_call.1} parent=1 // loop_body
      %s20 = ssub.s32 %s15, 1
      %s21 = ssub.s32 %s15, 2
      %s22 = sadd.s32 %s15, 1
      %s24 = sadd.s32 %s23, 1
      %p27 = scmp.eq.s32.totalorder %s15, 1
      %p28 = scmp.ne.s32.totalorder %s23, %s25
      %p29 = scmp.eq.s32.totalorder %s15, 0
      %p30 = por %p28, %p29
      %p31 = scmp.ne.s32.totalorder %s23, %s25
      %p32 = scmp.eq.s32.totalorder %s20, 1
      %p33 = por %p31, %p32
      %p34 = scmp.ne.s32.totalorder %s25, %s26
      %p35 = scmp.eq.s32.totalorder %s20, 0
      %p36 = por %p34, %p35
      %p37 = scmp.ne.s32.totalorder %s25, %s26
      %p38 = scmp.eq.s32.totalorder %s21, 1
      %p39 = por %p37, %p38
      %p41 = scmp.ne.s32.totalorder %s26, %s40
      %p42 = scmp.eq.s32.totalorder %s21, 0
      %p43 = por %p41, %p42
      %s45 = sadd.s32 %s44, 1
      %p48 = scmp.eq.s32.totalorder %s15, 1
      %p49 = scmp.ne.s32.totalorder %s44, %s46
      %p50 = scmp.eq.s32.totalorder %s15, 0
      %p51 = por %p49, %p50
      %p52 = scmp.ne.s32.totalorder %s44, %s46
      %p53 = scmp.eq.s32.totalorder %s20, 1
      %p54 = por %p52, %p53
      %p55 = scmp.ne.s32.totalorder %s46, %s47
      %p56 = scmp.eq.s32.totalorder %s20, 0
      %p57 = por %p55, %p56
      %p58 = scmp.ne.s32.totalorder %s46, %s47
      %p59 = scmp.eq.s32.totalorder %s21, 1
      %p60 = por %p58, %p59
      %p62 = scmp.ne.s32.totalorder %s47, %s61
      %p63 = scmp.eq.s32.totalorder %s21, 0
      %p64 = por %p62, %p63
      %s65 = ssub.s32 %s15, %s22
      %p66 = scmp.eq.s32.totalorder %s65, 0
      %s68 = sadd.s32 %s67, 1
      %s69 = scalar_select %p66, %s67, %s68
      %p72 = pneg %p66
      %p73 = scmp.eq.s32.totalorder %s15, 1
      %p74 = por %p72, %p73
      %p75 = scmp.ne.s32.totalorder %s67, %s70
      %p76 = scmp.eq.s32.totalorder %s15, 0
      %p77 = por %p75, %p76
      %p78 = scmp.ne.s32.totalorder %s67, %s70
      %p79 = scmp.eq.s32.totalorder %s20, 1
      %p80 = por %p78, %p79
      %p81 = scmp.ne.s32.totalorder %s70, %s71
      %p82 = scmp.eq.s32.totalorder %s20, 0
      %p83 = por %p81, %p82
      %p84 = scmp.ne.s32.totalorder %s70, %s71
      %p85 = scmp.eq.s32.totalorder %s21, 1
      %p86 = por %p84, %p85
      %p88 = scmp.ne.s32.totalorder %s71, %s87
      %p89 = scmp.eq.s32.totalorder %s21, 0
      %p90 = por %p88, %p89
      %s91 = ssub.s32 %s15, %s22
      %p92 = scmp.eq.s32.totalorder %s91, 0
      %s94 = sadd.s32 %s93, 1
      %s95 = scalar_select %p92, %s93, %s94
      %p98 = pneg %p92
      %p99 = scmp.eq.s32.totalorder %s15, 1
      %p100 = por %p98, %p99
      %p101 = scmp.ne.s32.totalorder %s93, %s96
      %p102 = scmp.eq.s32.totalorder %s15, 0
      %p103 = por %p101, %p102
      %p104 = scmp.ne.s32.totalorder %s93, %s96
      %p105 = scmp.eq.s32.totalorder %s20, 1
      %p106 = por %p104, %p105
      %p107 = scmp.ne.s32.totalorder %s96, %s97
      %p108 = scmp.eq.s32.totalorder %s20, 0
      %p109 = por %p107, %p108
      %p110 = scmp.ne.s32.totalorder %s96, %s97
      %p111 = scmp.eq.s32.totalorder %s21, 1
      %p112 = por %p110, %p111
      %p114 = scmp.ne.s32.totalorder %s97, %s113
      %p115 = scmp.eq.s32.totalorder %s21, 0
      %p116 = por %p114, %p115
      %p117 = scmp.le.s32.totalorder 1, %s15
      %p118 = scmp.lt.s32.totalorder %s15, 3
      %p119 = pnand %p117, %p118
      %p120 = pneg %p119
      // Predicated region
      $region9: #{tpu_custom_call.1} parent=5 // pred_check
        _
      $region10: #{tpu_custom_call.1} parent=5 // pred_check_branch
        %122 = sbr.rel (%p119) target = $region12
      $region11: #{tpu_custom_call.1} parent=5 // pred_region
        %s123 = ssub.s32 %s15, 1
        // Predicated region
        $region13: #{tpu_custom_call.1} parent=11 // pred_check
          %p124 = pneg %p36
        $region14: #{tpu_custom_call.1} parent=11 // pred_check_branch
          %126 = sbr.rel (%p124) target = $region16
        $region15: #{tpu_custom_call.1} parent=11 // pred_region
          _
        $region16: #{tpu_custom_call.1} parent=11 // pred_fallthru
          _
        // Predicated region
        $region17: #{tpu_custom_call.1} parent=11 // pred_check
          %p127 = pneg %p57
        $region18: #{tpu_custom_call.1} parent=11 // pred_check_branch
          %129 = sbr.rel (%p127) target = $region20
        $region19: #{tpu_custom_call.1} parent=11 // pred_region
          _
        $region20: #{tpu_custom_call.1} parent=11 // pred_fallthru
          _
      $region12: #{tpu_custom_call.1} parent=5 // pred_fallthru
        _
      %p130 = scmp.lt.s32.totalorder %s15, 2
      // Predicated region
      $region21: #{tpu_custom_call.1} parent=5 // pred_check
        %p131 = pneg %p130
      $region22: #{tpu_custom_call.1} parent=5 // pred_check_branch
        %133 = sbr.rel (%p131) target = $region24
      $region23: #{tpu_custom_call.1} parent=5 // pred_region
        // Predicated region
        $region25: #{tpu_custom_call.1} parent=23 // pred_check
          %p134 = pneg %p77
        $region26: #{tpu_custom_call.1} parent=23 // pred_check_branch
          %136 = sbr.rel (%p134) target = $region28
        $region27: #{tpu_custom_call.1} parent=23 // pred_region
          %s137 = sand.u32 %s67, 1
          %s138 = scalar_lea.sflag [#allocation3], %s137
          %s139 = sand.u32 %s67, 1
          %s140 = smul.addr %s139, 64
          %s141 = scalar_lea.vmem [#allocation2], %s140
          %s143 = ssub.s32 1024, 1024
          %144 = vsyncadd %s138, %s143
          %s145 = smul.addr %s15, 8
          %s146 = smul.addr %s145, 128
          %s147 = scalar_lea.hbm %s2, %s146
          %s148 = sshll.u32 %s141, 4
          %s149 = int_to_ptr.vmem [resolvable:$true] %s148
          %154 = dma.hbm_to_vmem [thread:$0]  %s147, 1024, %s149, %s138, 256, 256, 16
        $region28: #{tpu_custom_call.1} parent=23 // pred_fallthru
          _
      $region24: #{tpu_custom_call.1} parent=5 // pred_fallthru
        _
      %p155 = scmp.le.s32.totalorder 1, %s15
      %p156 = scmp.lt.s32.totalorder %s15, 3
      %p157 = pnand %p155, %p156
      %p158 = pneg %p157
      // Predicated region
      $region29: #{tpu_custom_call.1} parent=5 // pred_check
        _
      $region30: #{tpu_custom_call.1} parent=5 // pred_check_branch
        %160 = sbr.rel (%p157) target = $region32
      $region31: #{tpu_custom_call.1} parent=5 // pred_region
        %s161 = ssub.s32 %s15, 1
        %s162 = sand.u32 %s70, 1
        %s163 = scalar_lea.sflag [#allocation3], %s162
        %s164 = sand.u32 %s70, 1
        %s165 = smul.addr %s164, 64
        %s166 = scalar_lea.vmem [#allocation2], %s165
        // Predicated region
        $region33: #{tpu_custom_call.1} parent=31 // pred_check
          %p167 = pneg %p83
        $region34: #{tpu_custom_call.1} parent=31 // pred_check_branch
          %169 = sbr.rel (%p167) target = $region36
        $region35: #{tpu_custom_call.1} parent=31 // pred_region
          %170 = dma.done %s163, 1024
        $region36: #{tpu_custom_call.1} parent=31 // pred_fallthru
          _
        %p171 = pneg %p36
        %p172 = pneg %p33
        %p173 = pneg %p57
        %p174 = pneg %p54
        %s175 = sand.u32 %s70, 1
        %s176 = scalar_lea.sflag [#allocation3], %s175
        %s177 = sand.u32 %s70, 1
        %s178 = smul.addr %s177, 64
        %s179 = scalar_lea.vmem [#allocation2], %s178
        %p180 = pneg %p83
        %p181 = pneg %p80
        %p182 = pneg %p109
        %p183 = pneg %p106
        %s184 = sand.u32 %s96, 1
        %s185 = scalar_lea.sflag [#allocation4], %s184
        %s186 = sand.u32 %s96, 1
        %s187 = smul.addr %s186, 64
        %s188 = scalar_lea.vmem [#allocation5], %s187
        %v189 = vld [vmem:[%s166] sm:$0xff]
        %v190 = vld [vmem:[%s166 + $0x8] sm:$0xff]
        %v191 = vld [vmem:[%s166 + $0x10] sm:$0xff]
        %v192 = vld [vmem:[%s166 + $0x18] sm:$0xff]
        %v193 = vld [vmem:[%s166 + $0x20] sm:$0xff]
        %v194 = vld [vmem:[%s166 + $0x28] sm:$0xff]
        %v195 = vld [vmem:[%s166 + $0x30] sm:$0xff]
        %v196 = vld [vmem:[%s166 + $0x38] sm:$0xff]
        %v197 = vadd.f32 %v189, %v190
        %198 = vadd.xlane.f32.xlu0 %v197
        %v199 = vpop.xlane.xlu0 %198
        %v200 = vadd.f32 %v191, %v192
        %201 = vadd.xlane.f32.xlu0 %v200
        %v202 = vpop.xlane.xlu0 %201
        %v203 = vadd.f32 %v193, %v194
        %204 = vadd.xlane.f32.xlu0 %v203
        %v205 = vpop.xlane.xlu0 %204
        %v206 = vadd.f32 %v195, %v196
        %207 = vadd.xlane.f32.xlu0 %v206
        %v208 = vpop.xlane.xlu0 %207
        %v209 = vrcp.pop 256.0
        %v210 = vmul.f32 %v199, %v209
        %v211 = vmul.f32 %v202, %v209
        %v212 = vmul.f32 %v205, %v209
        %v213 = vmul.f32 %v208, %v209
        %v214 = vmax.f32 %v189, %v190
        %215 = vmax.xlane.f32.xlu0 %v214
        %v216 = vpop.xlane.xlu0 %215
        %v217 = vmax.f32 %v191, %v192
        %218 = vmax.xlane.f32.xlu0 %v217
        %v219 = vpop.xlane.xlu0 %218
        %v220 = vmax.f32 %v193, %v194
        %221 = vmax.xlane.f32.xlu0 %v220
        %v222 = vpop.xlane.xlu0 %221
        %v223 = vmax.f32 %v195, %v196
        %224 = vmax.xlane.f32.xlu0 %v223
        %v225 = vpop.xlane.xlu0 %224
        %v226 = vld [vmem:[%s0] sm:$0xff]
        %v227 = vld [vmem:[%s0 + $0x8] sm:$0xff]
        %v228 = vld [vmem:[%s0 + $0x10] sm:$0xff]
        %v229 = vld [vmem:[%s0 + $0x18] sm:$0xff]
        %v230 = vld [vmem:[%s1] sm:$0xff]
        %v231 = vld [vmem:[%s1 + $0x8] sm:$0xff]
        %v232 = vld [vmem:[%s1 + $0x10] sm:$0xff]
        %v233 = vld [vmem:[%s1 + $0x18] sm:$0xff]
        %v234 = vmul.f32 %v210, %v226
        %v235 = vmul.f32 %v211, %v227
        %v236 = vmul.f32 %v212, %v228
        %v237 = vmul.f32 %v213, %v229
        %vm238 = vcmask 64512
        %v239 = vsel %vm238, %v234, 0.0
        %v240 = vsel %vm238, %v235, 0.0
        %v241 = vadd.f32 %v239, %v240
        %v242 = vsel %vm238, %v236, 0.0
        %v243 = vadd.f32 %v241, %v242
        %v244 = vsel %vm238, %v237, 0.0
        %v245 = vadd.f32 %v243, %v244
        %v246 = vrot.slane %v245, 4
        %v247 = vadd.f32 %v245, %v246
        %v248 = vrot.slane %v247, 2
        %v249 = vadd.f32 %v247, %v248
        %v250 = vrot.slane %v249, 1
        %v251 = vadd.f32 %v249, %v250
        %v252 = vmax.f32 %v251, 0.0
        %v253 = vmul.f32 %v252, %v230
        %v254 = vmul.f32 %v252, %v231
        %v255 = vmul.f32 %v252, %v232
        %v256 = vmul.f32 %v252, %v233
        %v257 = vsel %vm238, %v253, 0.0
        %258 = vadd.xlane.f32.xlu0 %v257
        %v259 = vpop.xlane.xlu0 %258
        %v260 = vsel %vm238, %v254, 0.0
        %261 = vadd.xlane.f32.xlu0 %v260
        %v262 = vpop.xlane.xlu0 %261
        %v263 = vsel %vm238, %v255, 0.0
        %264 = vadd.xlane.f32.xlu0 %v263
        %v265 = vpop.xlane.xlu0 %264
        %v266 = vsel %vm238, %v256, 0.0
        %267 = vadd.xlane.f32.xlu0 %v266
        %v268 = vpop.xlane.xlu0 %267
        %v269 = vmul.f32 %v216, %v226
        %v270 = vmul.f32 %v219, %v227
        %v271 = vmul.f32 %v222, %v228
        %v272 = vmul.f32 %v225, %v229
        %v273 = vsel %vm238, %v269, 0.0
        %v274 = vsel %vm238, %v270, 0.0
        %v275 = vadd.f32 %v273, %v274
        %v276 = vsel %vm238, %v271, 0.0
        %v277 = vadd.f32 %v275, %v276
        %v278 = vsel %vm238, %v272, 0.0
        %v279 = vadd.f32 %v277, %v278
        %v280 = vrot.slane %v279, 4
        %v281 = vadd.f32 %v279, %v280
        %v282 = vrot.slane %v281, 2
        %v283 = vadd.f32 %v281, %v282
        %v284 = vrot.slane %v283, 1
        %v285 = vadd.f32 %v283, %v284
        %v286 = vmax.f32 %v285, 0.0
        %v287 = vmul.f32 %v286, %v230
        %v288 = vmul.f32 %v286, %v231
        %v289 = vmul.f32 %v286, %v232
        %v290 = vmul.f32 %v286, %v233
        %v291 = vsel %vm238, %v287, 0.0
        %292 = vadd.xlane.f32.xlu0 %v291
        %v293 = vpop.xlane.xlu0 %292
        %v294 = vsel %vm238, %v288, 0.0
        %295 = vadd.xlane.f32.xlu0 %v294
        %v296 = vpop.xlane.xlu0 %295
        %v297 = vsel %vm238, %v289, 0.0
        %298 = vadd.xlane.f32.xlu0 %v297
        %v299 = vpop.xlane.xlu0 %298
        %v300 = vsel %vm238, %v290, 0.0
        %301 = vadd.xlane.f32.xlu0 %v300
        %v302 = vpop.xlane.xlu0 %301
        %v303 = vadd.f32 %v259, %v293
        %v304 = vadd.f32 %v262, %v296
        %v305 = vadd.f32 %v265, %v299
        %v306 = vadd.f32 %v268, %v302
        %v307 = vxor.u32 %v303, 2147483648
        %v308 = vxor.u32 %v304, 2147483648
        %v309 = vxor.u32 %v305, 2147483648
        %v310 = vxor.u32 %v306, 2147483648
        %v311 = vmul.f32 %v307, 1.442695
        %v312 = vpow.pop %v311
        %v313 = vmul.f32 %v308, 1.442695
        %v314 = vpow.pop %v313
        %v315 = vmul.f32 %v309, 1.442695
        %v316 = vpow.pop %v315
        %v317 = vmul.f32 %v310, 1.442695
        %v318 = vpow.pop %v317
        %v319 = vadd.f32 %v312, 1.0
        %v320 = vadd.f32 %v314, 1.0
        %v321 = vadd.f32 %v316, 1.0
        %v322 = vadd.f32 %v318, 1.0
        %v323 = vrcp.pop %v319
        %v324 = vmul.f32 1.0, %v323
        %v325 = vrcp.pop %v320
        %v326 = vmul.f32 1.0, %v325
        %v327 = vrcp.pop %v321
        %v328 = vmul.f32 1.0, %v327
        %v329 = vrcp.pop %v322
        %v330 = vmul.f32 1.0, %v329
        %v331 = vmul.f32 %v189, %v324
        %v332 = vmul.f32 %v190, %v324
        %v333 = vmul.f32 %v191, %v326
        %v334 = vmul.f32 %v192, %v326
        %v335 = vmul.f32 %v193, %v328
        %v336 = vmul.f32 %v194, %v328
        %v337 = vmul.f32 %v195, %v330
        %v338 = vmul.f32 %v196, %v330
        %339 = vst [vmem:[%s188] sm:$0xff] %v331
        %340 = vst [vmem:[%s188 + $0x8] sm:$0xff] %v332
        %341 = vst [vmem:[%s188 + $0x10] sm:$0xff] %v333
        %342 = vst [vmem:[%s188 + $0x18] sm:$0xff] %v334
        %343 = vst [vmem:[%s188 + $0x20] sm:$0xff] %v335
        %344 = vst [vmem:[%s188 + $0x28] sm:$0xff] %v336
        %345 = vst [vmem:[%s188 + $0x30] sm:$0xff] %v337
        %346 = vst [vmem:[%s188 + $0x38] sm:$0xff] %v338
        %s347 = sand.u32 %s96, 1
        %s348 = scalar_lea.sflag [#allocation4], %s347
        %s349 = sand.u32 %s96, 1
        %s350 = smul.addr %s349, 64
        %s351 = scalar_lea.vmem [#allocation5], %s350
        // Predicated region
        $region37: #{tpu_custom_call.1} parent=31 // pred_check
          %p352 = pneg %p106
        $region38: #{tpu_custom_call.1} parent=31 // pred_check_branch
          %354 = sbr.rel (%p352) target = $region40
        $region39: #{tpu_custom_call.1} parent=31 // pred_region
          %s356 = ssub.s32 1024, 1024
          %357 = vsyncadd %s348, %s356
          %s358 = smul.addr %s20, 8
          %s359 = smul.addr %s358, 128
          %s360 = scalar_lea.hbm %s3, %s359
          %s361 = sshll.u32 %s351, 4
          %s362 = int_to_ptr.vmem [resolvable:$true] %s361
          %367 = dma.vmem_to_hbm [thread:$0]  %s362, 1024, %s360, %s348, 256, 256, 16
        $region40: #{tpu_custom_call.1} parent=31 // pred_fallthru
          _
      $region32: #{tpu_custom_call.1} parent=5 // pred_fallthru
        _
      %p368 = scmp.le.s32.totalorder 2, %s15
      // Predicated region
      $region41: #{tpu_custom_call.1} parent=5 // pred_check
        %p369 = pneg %p368
      $region42: #{tpu_custom_call.1} parent=5 // pred_check_branch
        %371 = sbr.rel (%p369) target = $region44
      $region43: #{tpu_custom_call.1} parent=5 // pred_region
        %s372 = ssub.s32 %s15, 2
        // Predicated region
        $region45: #{tpu_custom_call.1} parent=43 // pred_check
          %p373 = pneg %p112
        $region46: #{tpu_custom_call.1} parent=43 // pred_check_branch
          %375 = sbr.rel (%p373) target = $region48
        $region47: #{tpu_custom_call.1} parent=43 // pred_region
          %s376 = sand.u32 %s97, 1
          %s377 = scalar_lea.sflag [#allocation4], %s376
          %s378 = sand.u32 %s97, 1
          %s379 = smul.addr %s378, 64
          %s380 = scalar_lea.vmem [#allocation5], %s379
          %381 = dma.done %s377, 1024
        $region48: #{tpu_custom_call.1} parent=43 // pred_fallthru
          _
      $region44: #{tpu_custom_call.1} parent=5 // pred_fallthru
        _
    $region6: #{tpu_custom_call.1} parent=1 // loop_footer
      %s19 = sadd.s32 1, %s15
    $region7: #{tpu_custom_call.1} parent=1 // loop_footer_branch
      %14 = sbr.rel target = $region3
    $region8: #{tpu_custom_call.1} parent=1 // loop_exit
      _
    %382 = vsyncpa [#allocation3], 1
    %s383 = scalar_lea.sflag [#allocation3], 1
    %384 = vsyncpa %s383, 1
    %385 = vsyncpa [#allocation4], 1
    %s386 = scalar_lea.sflag [#allocation4], 1
    %387 = vsyncpa %s386, 1

</llo_original>
